<compile_context>
chip_gen: v5e
topology: v5e:2x2
jax: 0.10.0
libtpu: 0.0.40
codegen_flags: <defaults>
</compile_context>

<pallas_src>
import math
import functools

import jax
import jax.numpy as jnp
from jax.experimental import pallas as pl
from jax.experimental.pallas import tpu as pltpu


def make_pe(max_len: int, d_model: int) -> jnp.ndarray:
    """Sinusoidal positional-encoding buffer, shape (max_len, 1, d_model).

    NOTE: like the PyTorch original, this assumes an even d_model.
    """
    position = jnp.arange(max_len, dtype=jnp.float32)[:, None]            # (max_len, 1)
    div_term = jnp.exp(
        jnp.arange(0, d_model, 2, dtype=jnp.float32) * (-math.log(10000.0) / d_model)
    )                                                                     # (d_model/2,)
    pe = jnp.zeros((max_len, d_model), dtype=jnp.float32)
    pe = pe.at[:, 0::2].set(jnp.sin(position * div_term))
    pe = pe.at[:, 1::2].set(jnp.cos(position * div_term))
    # matches pe.unsqueeze(0).transpose(0, 1) -> (max_len, 1, d_model)
    return pe[:, None, :]


def _pe_dropout_kernel(seed_ref, x_ref, pe_ref, o_ref, *, p: float, train: bool,
                       ts: int, bd: int):
    # x_ref / pe_ref / o_ref blocks: (ts, bd) -- lane-dense element-wise add.
    y = x_ref[...] + pe_ref[...]

    if train and p > 0.0:
        # nn.Dropout(p) training semantics: zero with prob p, scale by 1/(1-p).
        # Counter-based PRNG: hash(absolute flat index, seed) -> uint32, then a
        # single uint32 threshold compare.  Tiling-independent and backend-safe.
        rows = jax.lax.broadcasted_iota(jnp.uint32, y.shape, 0)
        cols = jax.lax.broadcasted_iota(jnp.uint32, y.shape, 1)
        abs_row = (pl.program_id(0) * ts).astype(jnp.uint32) + rows
        idx = abs_row * jnp.uint32(bd) + cols                             # absolute index
        seed_u = seed_ref[0].astype(jnp.uint32)

        h = idx * jnp.uint32(0x9E3779B1) + seed_u                         # golden-ratio mix
        h = h ^ (h >> 16)                                                 # murmur3 fmix32
        h = h * jnp.uint32(0x85EBCA6B)
        h = h ^ (h >> 13)
        h = h * jnp.uint32(0xC2B2AE35)
        h = h ^ (h >> 16)

        threshold = jnp.uint32(min(int(round(p * (1 << 32))), (1 << 32) - 1))
        keep = h >= threshold                                             # P(drop) = p
        y = jnp.where(keep, y * (1.0 / (1.0 - p)), 0.0)

    o_ref[...] = y.astype(o_ref.dtype)


def positional_encoding(x, pe_full, *, p: float = 0.1, train: bool = False,
                        seed: int = 0, tile_bytes: int = 2 * 1024 * 1024):
    """x: [seq_len, batch, d_model].  pe_full: (max_len, 1, d_model)."""
    S, B, D = x.shape
    BD = B * D

    # Lane-dense 2D views: flatten (batch, d_model) into the lane axis.
    x2 = x.reshape(S, BD)
    # Broadcast pe over batch once in plain JAX; kernel stays a pure add.
    pe2 = jnp.broadcast_to(pe_full[:S], (S, B, D)).reshape(S, BD).astype(x.dtype)

    # Sequence-tile size: ~tile_bytes per tile (amortizes the ~0.35us/step grid
    # overhead), multiple of 8 sublanes, capped at S.  3 streams x 2 buffers x
    # 2 MiB ~= 12 MiB of VMEM -> fits every generation's scoped default.
    row_bytes = BD * x.dtype.itemsize
    ts = max(8, (tile_bytes // max(row_bytes, 1)) // 8 * 8)
    if ts >= S:
        ts = S                      # single block spanning the full seq axis
    grid = (pl.cdiv(S, ts),)

    seed_arr = jnp.array([seed], dtype=jnp.int32)
    kernel = functools.partial(_pe_dropout_kernel, p=p, train=train, ts=ts, bd=BD)

    grid_spec = pltpu.PrefetchScalarGridSpec(
        num_scalar_prefetch=1,                                            # seed -> SMEM
        grid=grid,
        in_specs=[
            pl.BlockSpec((ts, BD), lambda i, s: (i, 0)),                  # x tile
            pl.BlockSpec((ts, BD), lambda i, s: (i, 0)),                  # pe tile
        ],
        out_specs=pl.BlockSpec((ts, BD), lambda i, s: (i, 0)),
    )

    out2 = pl.pallas_call(
        kernel,
        out_shape=jax.ShapeDtypeStruct((S, BD), x.dtype),
        grid_spec=grid_spec,
        compiler_params=pltpu.CompilerParams(
            dimension_semantics=("parallel",),                            # seq tiles independent
            vmem_limit_bytes=32 * 1024 * 1024,
        ),
    )(seed_arr, x2, pe2)

    return out2.reshape(S, B, D)


if __name__ == "__main__":
    SEQ, BATCH, D_MODEL, MAX_LEN = 8, 2, 32, 64
    P = 0.1

    key = jax.random.PRNGKey(0)
    x = jax.random.normal(key, (SEQ, BATCH, D_MODEL), dtype=jnp.float32)
    pe_full = make_pe(MAX_LEN, D_MODEL)

    ref = x + pe_full[:SEQ]

    # Eval-mode forward (dropout = identity): must equal x + pe.
    out_eval = jax.block_until_ready(positional_encoding(x, pe_full, p=P, train=False))
    assert out_eval.shape == (SEQ, BATCH, D_MODEL)
    assert jnp.allclose(out_eval, ref, atol=1e-6), "eval-mode mismatch vs reference"

    # Training-mode forward: every element is either 0 (dropped) or ref/(1-p).
    out_train = jax.block_until_ready(positional_encoding(x, pe_full, p=P, train=True, seed=0))
    assert out_train.shape == (SEQ, BATCH, D_MODEL)
    kept_ok = jnp.isclose(out_train, ref / (1.0 - P), atol=1e-5, rtol=1e-5)
    dropped = out_train == 0.0
    assert bool(jnp.all(kept_ok | dropped)), "training-mode values are not valid dropout outputs"
    assert bool(jnp.any(dropped)), "dropout dropped nothing in training mode"

    print("KERNEL_OK")
</pallas_src>

<mosaic_0001>
module attributes {stable_mosaic.version = 11 : i64} {
  func.func @_pe_dropout_kernel(%arg0: i32, %arg1: memref<1xi32, #tpu.memory_space<smem>>, %arg2: memref<8x64xf32, #tpu.memory_space<vmem>>, %arg3: memref<8x64xf32, #tpu.memory_space<vmem>>, %arg4: memref<8x64xf32, #tpu.memory_space<vmem>>) attributes {dimension_semantics = [#tpu.dimension_semantics<parallel>], iteration_bounds = array<i64: 1>, scalar_prefetch = 1 : i64, scratch_operands = 0 : i64, tpu.core_type = #tpu.core_type<tc>, window_params = [{transform_indices = @transform_0, window_bounds = array<i64: 8, 64>}, {transform_indices = @transform_1, window_bounds = array<i64: 8, 64>}, {transform_indices = @transform_2, window_bounds = array<i64: 8, 64>}]} {
    %c0 = arith.constant 0 : index
    %c0_0 = arith.constant 0 : index
    %0 = vector.load %arg2[%c0, %c0_0] : memref<8x64xf32, #tpu.memory_space<vmem>>, vector<8x64xf32>
    %c0_1 = arith.constant 0 : index
    %c0_2 = arith.constant 0 : index
    %1 = vector.load %arg3[%c0_1, %c0_2] : memref<8x64xf32, #tpu.memory_space<vmem>>, vector<8x64xf32>
    %2 = arith.addf %0, %1 : vector<8x64xf32>
    %c0_3 = arith.constant 0 : index
    %c0_4 = arith.constant 0 : index
    %3 = vector.load %arg4[%c0_3, %c0_4] : memref<8x64xf32, #tpu.memory_space<vmem>>, vector<8x64xf32>
    tpu.vector_store %arg4[%c0_3, %c0_4], %2 {strides = array<i32>} : memref<8x64xf32, #tpu.memory_space<vmem>>, vector<8x64xf32>,
    return
  }
  func.func @transform_0(%arg0: i32, %arg1: memref<1xi32, #tpu.memory_space<smem>>) -> (i32, i32) {
    %c0_i32 = arith.constant 0 : i32
    %c0_i32_0 = arith.constant 0 : i32
    return %arg0, %c0_i32 : i32, i32
  }
  func.func @transform_1(%arg0: i32, %arg1: memref<1xi32, #tpu.memory_space<smem>>) -> (i32, i32) {
    %c0_i32 = arith.constant 0 : i32
    %c0_i32_0 = arith.constant 0 : i32
    return %arg0, %c0_i32 : i32, i32
  }
  func.func @transform_2(%arg0: i32, %arg1: memref<1xi32, #tpu.memory_space<smem>>) -> (i32, i32) {
    %c0_i32 = arith.constant 0 : i32
    %c0_i32_0 = arith.constant 0 : i32
    return %arg0, %c0_i32 : i32, i32
  }
}

</mosaic_0001>

<llo_original>
// kernel: tpu_custom_call.1
$region0: #{tpu_custom_call.1}
  #allocation0 [shape = 'u32[]', space=smem, size = 0x4, offset = 0x4, fixed_abs, tag = 'smem constant byte address 0x4 - core index']
  #allocation1 [shape = 'u32[72,128]{1,0:T(1,128)}', space=vmem, size = 0x9000, scoped, tag = 'internal scratch']
  #allocation2 [shape = 's32[1]{0}', space=sflag, size = 0x4, scoped, tag = 'scoped memory for tpu_custom_call.1']
  #allocation3 [shape = 's32[1]{0:T(128)S(6)}', space=smem, size = 0x200, scoped, tag = 'prefetched SMEM operand 0']
  %s0 = inlined_call_operand.<no memory space> [shape: s32[1], index: 0, kind: input, shape index: {}]
  %s1 = inlined_call_operand.hbm [shape: f32[8,64], index: 1, kind: input, shape index: {}]
  %s2 = inlined_call_operand.hbm [shape: f32[8,64], index: 2, kind: input, shape index: {}]
  %s3 = inlined_call_operand.hbm [shape: f32[8,64], index: 3, kind: output, shape index: {}]
  %s4 = sld [smem:[#allocation0]]
  $region26: #{tpu_custom_call.1} parent=0
    _
  %s6 = ssub.s32 1, %s4
  %s7 = scalar_select 0, %s6, %s4
  %8 = sst [smem:[#allocation3]] %s0
  $region1: #{tpu_custom_call.1} parent=0
    #allocation4 [shape = 'u8[4096]{0}', space=vmem, size = 0x1000, scoped, tag = 'input window, operand 1, single buffered']
    #allocation5 [shape = 's32[1]{0}', space=sflag, size = 0x4, scoped, tag = 'scoped memory for tpu_custom_call.1']
    #allocation6 [shape = 's32[1]{0}', space=sflag, size = 0x4, scoped, tag = 'scoped memory for tpu_custom_call.1']
    #allocation7 [shape = 'u8[4096]{0}', space=vmem, size = 0x1000, scoped, tag = 'input window, operand 2, single buffered']
    #allocation8 [shape = 's32[1]{0}', space=sflag, size = 0x4, scoped, tag = 'scoped memory for tpu_custom_call.1']
    #allocation9 [shape = 'u8[4096]{0}', space=vmem, size = 0x1000, scoped, tag = 'output window, operand 0, single buffered']
    %9 = vsyncpa [#allocation5], 0
    %10 = vsyncpa [#allocation8], 0
    %11 = vsyncpa [#allocation6], 0
    // Predicated region
    $region2: #{tpu_custom_call.1} parent=1 // pred_check
      _
    $region3: #{tpu_custom_call.1} parent=1 // pred_check_branch
      %13 = sbr.rel (0) target = $region5
    $region4: #{tpu_custom_call.1} parent=1 // pred_region
      %15 = vsyncadd [#allocation5], 0
      %s17 = sshll.u32 %s1, 4
      %s18 = int_to_ptr.hbm [resolvable:$true] %s17
      %s19 = sshll.u32 [#allocation4], 4
      %s20 = int_to_ptr.vmem [resolvable:$true] %s19
      %22 = dma.hbm_to_vmem [thread:$0]  %s18, 128, %s20, [#allocation5]
    $region5: #{tpu_custom_call.1} parent=1 // pred_fallthru
      _
    // Predicated region
    $region6: #{tpu_custom_call.1} parent=1 // pred_check
      _
    $region7: #{tpu_custom_call.1} parent=1 // pred_check_branch
      %24 = sbr.rel (0) target = $region9
    $region8: #{tpu_custom_call.1} parent=1 // pred_region
      %26 = vsyncadd [#allocation8], 0
      %s28 = sshll.u32 %s2, 4
      %s29 = int_to_ptr.hbm [resolvable:$true] %s28
      %s30 = sshll.u32 [#allocation7], 4
      %s31 = int_to_ptr.vmem [resolvable:$true] %s30
      %33 = dma.hbm_to_vmem [thread:$0]  %s29, 128, %s31, [#allocation8]
    $region9: #{tpu_custom_call.1} parent=1 // pred_fallthru
      _
    // Predicated region
    $region10: #{tpu_custom_call.1} parent=1 // pred_check
      _
    $region11: #{tpu_custom_call.1} parent=1 // pred_check_branch
      %35 = sbr.rel (0) target = $region13
    $region12: #{tpu_custom_call.1} parent=1 // pred_region
      %37 = dma.done [#allocation5], 128
    $region13: #{tpu_custom_call.1} parent=1 // pred_fallthru
      _
    // Predicated region
    $region14: #{tpu_custom_call.1} parent=1 // pred_check
      _
    $region15: #{tpu_custom_call.1} parent=1 // pred_check_branch
      %39 = sbr.rel (0) target = $region17
    $region16: #{tpu_custom_call.1} parent=1 // pred_region
      %41 = dma.done [#allocation8], 128
    $region17: #{tpu_custom_call.1} parent=1 // pred_fallthru
      _
    %v42 = vld [vmem:[#allocation4] sm:$0xff]
    %v43 = vld [vmem:[#allocation7] sm:$0xff]
    %v44 = vadd.f32 %v42, %v43
    %vm45 = vcmask 523264
    %46 = vst.msk [vmem:[#allocation9] sm:$0xff] %vm45, %v44
    // Predicated region
    $region18: #{tpu_custom_call.1} parent=1 // pred_check
      _
    $region19: #{tpu_custom_call.1} parent=1 // pred_check_branch
      %48 = sbr.rel (0) target = $region21
    $region20: #{tpu_custom_call.1} parent=1 // pred_region
      %50 = vsyncadd [#allocation6], 0
      %s52 = sshll.u32 [#allocation9], 4
      %s53 = int_to_ptr.vmem [resolvable:$true] %s52
      %s54 = sshll.u32 %s3, 4
      %s55 = int_to_ptr.hbm [resolvable:$true] %s54
      %57 = dma.vmem_to_hbm [thread:$0]  %s53, 128, %s55, [#allocation6]
    $region21: #{tpu_custom_call.1} parent=1 // pred_fallthru
      _
    // Predicated region
    $region22: #{tpu_custom_call.1} parent=1 // pred_check
      _
    $region23: #{tpu_custom_call.1} parent=1 // pred_check_branch
      %59 = sbr.rel (0) target = $region25
    $region24: #{tpu_custom_call.1} parent=1 // pred_region
      %61 = dma.done [#allocation6], 128
    $region25: #{tpu_custom_call.1} parent=1 // pred_fallthru
      _
    %62 = vsyncpa [#allocation5], 1
    %63 = vsyncpa [#allocation8], 1
    %64 = vsyncpa [#allocation6], 1

</llo_original>
